<compile_context>
chip_gen: v7x
topology: tpu7x:2x2x1
jax: 0.10.0
libtpu: 0.0.40
codegen_flags: <defaults>
</compile_context>

<pallas_src>
import jax
import jax.numpy as jnp
from jax.experimental import pallas as pl
from jax.experimental.pallas import tpu as pltpu

ALPHA = 0.1    # APPNP teleport probability
K_HOPS = 2     # APPNP propagation steps
LANE = 128     # TPU lane width  (padded width of every feature/class/node axis)
SUB = 8        # TPU sublane granularity


def _round_up(v, m):
    return (v + m - 1) // m * m


# --------------------------------- kernel ------------------------------------
def make_appnp2_kernel(n_pad, b_pad, lane):
    """Bake the slab row offsets into the kernel body (all static slices)."""
    x_off, adj_off, pool_off = 0, n_pad, 2 * n_pad         # data slab rows
    w1_off, w2_off, w3_off, bias_off = 0, lane, 2 * lane, 3 * lane  # param slab rows

    def kernel(data_ref, p_ref, out_ref):
        # Per-batch operands (all 128-wide, offsets aligned to sublane tiles).
        x = data_ref[x_off:x_off + n_pad, :]          # [N_PAD, F_PAD]
        adj = data_ref[adj_off:adj_off + n_pad, :]    # [N_PAD, N_PAD]
        pool = data_ref[pool_off:pool_off + b_pad, :] # [B_PAD, N_PAD]

        # Shared parameters.
        w1 = p_ref[w1_off:w1_off + lane, :]           # [F_PAD, H_PAD]
        w2 = p_ref[w2_off:w2_off + lane, :]           # [H_PAD, H_PAD]
        w3 = p_ref[w3_off:w3_off + lane, :]           # [H_PAD, C_PAD]
        bias = p_ref[bias_off:bias_off + SUB, :]      # [8, 128]  one vreg
        b1, b2, b3 = bias[0:1, :], bias[1:2, :], bias[2:3, :]

        # lin1 + ReLU   (dropout layers are identity in eval mode)
        h = jnp.dot(x, w1, preferred_element_type=jnp.float32) + b1
        h = jnp.maximum(h, 0.0)

        # lin2
        h = jnp.dot(h, w2, preferred_element_type=jnp.float32) + b2

        # APPNP: x_{k+1} = (1-a) * Ahat @ x_k + a * x_0   (teleport term hoisted)
        h0a = ALPHA * h
        for _ in range(K_HOPS):  # K = 2, statically unrolled
            h = (1.0 - ALPHA) * jnp.dot(adj, h,
                                        preferred_element_type=jnp.float32) + h0a

        # global_mean_pool as a matmul with the [B, N] pooling matrix
        g = jnp.dot(pool, h, preferred_element_type=jnp.float32)

        # final linear — single full-vreg (8x128) unmasked store
        out_ref[...] = jnp.dot(g, w3, preferred_element_type=jnp.float32) + b3

    return kernel


def appnp2_forward(data_slab, param_slab, *, n_pad, b_pad):
    """Run NUM_BATCHES forward passes under one pallas_call with a parallel grid."""
    nb, data_rows, lane = data_slab.shape
    kernel = make_appnp2_kernel(n_pad=n_pad, b_pad=b_pad, lane=lane)
    return pl.pallas_call(
        kernel,
        out_shape=jax.ShapeDtypeStruct((nb, b_pad, lane), jnp.float32),
        grid=(nb,),
        in_specs=[
            # per-batch data slab: one DMA per grid step
            pl.BlockSpec((None, data_rows, lane), lambda g: (g, 0, 0)),
            # shared parameter slab: constant block index (fetched once)
            pl.BlockSpec(param_slab.shape, lambda g: (0, 0)),
        ],
        out_specs=pl.BlockSpec((None, b_pad, lane), lambda g: (g, 0, 0)),
        compiler_params=pltpu.CompilerParams(
            dimension_semantics=("parallel",)),   # shard batches across TCs
    )(data_slab, param_slab)


# ------------------------------- JAX glue ------------------------------------
def build_normalized_adjacency(edge_index, num_nodes):
    """Dense GCN normalization with self-loops, built scatter-free via one-hot
    matmuls: D^-1/2 (A + I) D^-1/2 (undirected, multi-edges clamped to 1)."""
    src, dst = edge_index[0], edge_index[1]
    ids = jnp.arange(num_nodes)
    s_onehot = (src[:, None] == ids[None, :]).astype(jnp.float32)   # [E, N]
    d_onehot = (dst[:, None] == ids[None, :]).astype(jnp.float32)   # [E, N]
    counts = d_onehot.T @ s_onehot                                   # [N, N]
    a = counts + counts.T                                            # undirected
    a = jnp.minimum(a + jnp.eye(num_nodes, dtype=jnp.float32), 1.0)  # + self loops
    deg = a.sum(axis=1)
    d_inv_sqrt = jax.lax.rsqrt(jnp.maximum(deg, 1e-12))
    return a * d_inv_sqrt[:, None] * d_inv_sqrt[None, :]


def build_mean_pool(batch, num_graphs):
    """[B, N] matrix P with P[b, n] = 1/|graph b| if batch[n] == b else 0."""
    onehot = (batch[None, :] == jnp.arange(num_graphs)[:, None]).astype(jnp.float32)
    counts = jnp.maximum(onehot.sum(axis=1, keepdims=True), 1.0)
    return onehot / counts


def init_linear(key, fan_in, fan_out):
    """PyTorch nn.Linear default init: U(-1/sqrt(fan_in), 1/sqrt(fan_in))."""
    kw, kb = jax.random.split(key)
    bound = 1.0 / jnp.sqrt(jnp.float32(fan_in))
    w = jax.random.uniform(kw, (fan_in, fan_out), jnp.float32, -bound, bound)
    b = jax.random.uniform(kb, (1, fan_out), jnp.float32, -bound, bound)
    return w, b


def pack_operands(x, adj, pool, w1, b1, w2, b2, w3, b3):
    """Zero-pad everything to a lane-dense 128-wide layout and pack into two
    slabs: per-batch data slab [NB, 2*128 + B_PAD, 128] = (x | adj | pool), and
    one parameter slab [3*128 + 8, 128] = (w1 | w2 | w3 | bias tile)."""
    nb, n, f = x.shape
    b = pool.shape[1]
    h = w1.shape[1]
    c = w3.shape[1]
    # TODO(synk): for graphs with N/H/F/C > 128, tile the propagation matmul
    # over a grid (and use bf16 / sparse adjacency) instead of padding to 128.
    assert max(n, f, h, c) <= LANE
    b_pad = _round_up(b, SUB)

    def pad2(a, rows, cols):
        return jnp.pad(a, ((0, rows - a.shape[0]), (0, cols - a.shape[1])))

    x_p = jax.vmap(lambda m: pad2(m, LANE, LANE))(x)          # [NB, 128, 128]
    adj_p = jax.vmap(lambda m: pad2(m, LANE, LANE))(adj)      # [NB, 128, 128]
    pool_p = jax.vmap(lambda m: pad2(m, b_pad, LANE))(pool)   # [NB, B_PAD, 128]
    data_slab = jnp.concatenate([x_p, adj_p, pool_p], axis=1)

    bias_tile = jnp.zeros((SUB, LANE), jnp.float32)
    bias_tile = bias_tile.at[0, :h].set(b1[0])
    bias_tile = bias_tile.at[1, :h].set(b2[0])
    bias_tile = bias_tile.at[2, :c].set(b3[0])
    param_slab = jnp.concatenate(
        [pad2(w1, LANE, LANE), pad2(w2, LANE, LANE), pad2(w3, LANE, LANE), bias_tile],
        axis=0)
    return data_slab, param_slab, dict(n_pad=LANE, b_pad=b_pad)


def reference_forward(x, adj, pool, w1, b1, w2, b2, w3, b3):
    """Pure-JAX reference (HIGHEST-precision matmuls) of the eval-mode forward."""
    hp = jax.lax.Precision.HIGHEST
    h = jnp.maximum(jnp.einsum("bnf,fh->bnh", x, w1, precision=hp) + b1, 0.0)
    h = jnp.einsum("bnh,hk->bnk", h, w2, precision=hp) + b2
    h0 = h
    for _ in range(K_HOPS):
        h = (1.0 - ALPHA) * jnp.einsum("bij,bjh->bih", adj, h, precision=hp) \
            + ALPHA * h0
    g = jnp.einsum("bgn,bnh->bgh", pool, h, precision=hp)
    return jnp.einsum("bgh,hc->bgc", g, w3, precision=hp) + b3


if __name__ == "__main__":
    # dataset[0] = num node features, dataset[1] = num classes
    N, F_IN, HIDDEN, N_CLASSES, N_GRAPHS = 32, 16, 64, 8, 4
    NUM_EDGES = 64
    NUM_BATCHES = 8   # independent graph mini-batches processed per pallas_call

    key = jax.random.PRNGKey(0)
    kx, ke1, ke2, kb, k1, k2, k3 = jax.random.split(key, 7)

    # Synthetic stacked graph-batch inputs.
    x = jax.random.normal(kx, (NUM_BATCHES, N, F_IN), jnp.float32)
    src = jax.random.randint(ke1, (NUM_BATCHES, NUM_EDGES), 0, N)
    dst = jax.random.randint(ke2, (NUM_BATCHES, NUM_EDGES), 0, N)
    edge_index = jnp.stack([src, dst], axis=1).astype(jnp.int32)     # [NB, 2, E]
    batch = jnp.sort(jax.random.randint(kb, (NUM_BATCHES, N), 0, N_GRAPHS),
                     axis=-1).astype(jnp.int32)                      # [NB, N]

    # Deterministic parameters (shapes from __init__: lin1, lin2, lin).
    w1, b1 = init_linear(k1, F_IN, HIDDEN)
    w2, b2 = init_linear(k2, HIDDEN, HIDDEN)
    w3, b3 = init_linear(k3, HIDDEN, N_CLASSES)

    # Graph structure -> normalized adjacency + mean-pool matrix (precomputed,
    # scatter-free; reused across forward calls).
    adj = jax.vmap(build_normalized_adjacency, in_axes=(0, None))(edge_index, N)
    pool = jax.vmap(build_mean_pool, in_axes=(0, None))(batch, N_GRAPHS)

    # Pack + pad into the two lane-dense slabs the kernel consumes.
    data_slab, param_slab, dims = pack_operands(
        x, adj, pool, w1, b1, w2, b2, w3, b3)

    out_padded = appnp2_forward(data_slab, param_slab, **dims)
    out = out_padded[:, :N_GRAPHS, :N_CLASSES]
    jax.block_until_ready(out)

    # Sanity check against the pure-JAX reference.
    ref = reference_forward(x, adj, pool, w1, b1, w2, b2, w3, b3)
    assert out.shape == (NUM_BATCHES, N_GRAPHS, N_CLASSES)
    assert out.dtype == jnp.float32
    max_err = float(jnp.max(jnp.abs(out - ref)))
    assert max_err < 5e-2, f"max abs err {max_err}"
    print("KERNEL_OK")
</pallas_src>

<mosaic_0001>
module attributes {stable_mosaic.version = 11 : i64} {
  func.func @kernel(%arg0: i32, %arg1: memref<1x264x128xf32, #tpu.memory_space<vmem>>, %arg2: memref<392x128xf32, #tpu.memory_space<vmem>>, %arg3: memref<1x8x128xf32, #tpu.memory_space<vmem>>) attributes {dimension_semantics = [#tpu.dimension_semantics<parallel>], iteration_bounds = array<i64: 8>, scalar_prefetch = 0 : i64, scratch_operands = 0 : i64, tpu.core_type = #tpu.core_type<tc>, window_params = [{transform_indices = @transform_0, window_bounds = array<i64: 1, 264, 128>}, {pipeline_mode = #tpu.pipeline_mode<synchronous>, transform_indices = @transform_1, window_bounds = array<i64: 392, 128>}, {transform_indices = @transform_2, window_bounds = array<i64: 1, 8, 128>}]} {
    %c0 = arith.constant 0 : index
    %c0_0 = arith.constant 0 : index
    %c0_1 = arith.constant 0 : index
    %0 = vector.load %arg1[%c0, %c0_0, %c0_1] : memref<1x264x128xf32, #tpu.memory_space<vmem>>, vector<1x128x128xf32>
    %1 = vector.shape_cast %0 : vector<1x128x128xf32> to vector<128x128xf32>
    %c0_2 = arith.constant 0 : index
    %c128 = arith.constant 128 : index
    %c0_3 = arith.constant 0 : index
    %2 = vector.load %arg1[%c0_2, %c128, %c0_3] : memref<1x264x128xf32, #tpu.memory_space<vmem>>, vector<1x128x128xf32>
    %3 = vector.shape_cast %2 : vector<1x128x128xf32> to vector<128x128xf32>
    %c0_4 = arith.constant 0 : index
    %c256 = arith.constant 256 : index
    %c0_5 = arith.constant 0 : index
    %4 = vector.load %arg1[%c0_4, %c256, %c0_5] : memref<1x264x128xf32, #tpu.memory_space<vmem>>, vector<1x8x128xf32>
    %5 = vector.shape_cast %4 : vector<1x8x128xf32> to vector<8x128xf32>
    %c0_6 = arith.constant 0 : index
    %c0_7 = arith.constant 0 : index
    %6 = vector.load %arg2[%c0_6, %c0_7] : memref<392x128xf32, #tpu.memory_space<vmem>>, vector<128x128xf32>
    %c128_8 = arith.constant 128 : index
    %c0_9 = arith.constant 0 : index
    %7 = vector.load %arg2[%c128_8, %c0_9] : memref<392x128xf32, #tpu.memory_space<vmem>>, vector<128x128xf32>
    %c256_10 = arith.constant 256 : index
    %c0_11 = arith.constant 0 : index
    %8 = vector.load %arg2[%c256_10, %c0_11] : memref<392x128xf32, #tpu.memory_space<vmem>>, vector<128x128xf32>
    %c384 = arith.constant 384 : index
    %c0_12 = arith.constant 0 : index
    %9 = vector.load %arg2[%c384, %c0_12] : memref<392x128xf32, #tpu.memory_space<vmem>>, vector<8x128xf32>
    %10 = vector.extract_strided_slice %9 {offsets = [0, 0], sizes = [1, 128], strides = [1, 1]} : vector<8x128xf32> to vector<1x128xf32>
    %11 = vector.extract_strided_slice %9 {offsets = [1, 0], sizes = [1, 128], strides = [1, 1]} : vector<8x128xf32> to vector<1x128xf32>
    %12 = vector.extract_strided_slice %9 {offsets = [2, 0], sizes = [1, 128], strides = [1, 1]} : vector<8x128xf32> to vector<1x128xf32>
    %cst = arith.constant dense<0.000000e+00> : vector<128x128xf32>
    %13 = tpu.matmul %1, %6, %cst {dimension_numbers = #tpu.dot_dimension_numbers<[1], [0], [0], [1], [0, 0, 1, 1], [], []>} : vector<128x128xf32>, vector<128x128xf32>, vector<128x128xf32> -> vector<128x128xf32>
    %14 = vector.broadcast %10 : vector<1x128xf32> to vector<128x128xf32>
    %15 = arith.addf %13, %14 : vector<128x128xf32>
    %cst_13 = arith.constant 0.000000e+00 : f32
    %16 = vector.broadcast %cst_13 : f32 to vector<128x128xf32>
    %17 = arith.maximumf %15, %16 : vector<128x128xf32>
    %cst_14 = arith.constant dense<0.000000e+00> : vector<128x128xf32>
    %18 = tpu.matmul %17, %7, %cst_14 {dimension_numbers = #tpu.dot_dimension_numbers<[1], [0], [0], [1], [0, 0, 1, 1], [], []>} : vector<128x128xf32>, vector<128x128xf32>, vector<128x128xf32> -> vector<128x128xf32>
    %19 = vector.broadcast %11 : vector<1x128xf32> to vector<128x128xf32>
    %20 = arith.addf %18, %19 : vector<128x128xf32>
    %cst_15 = arith.constant 1.000000e-01 : f32
    %21 = vector.broadcast %cst_15 : f32 to vector<128x128xf32>
    %22 = arith.mulf %21, %20 : vector<128x128xf32>
    %cst_16 = arith.constant dense<0.000000e+00> : vector<128x128xf32>
    %23 = tpu.matmul %3, %20, %cst_16 {dimension_numbers = #tpu.dot_dimension_numbers<[1], [0], [0], [1], [0, 0, 1, 1], [], []>} : vector<128x128xf32>, vector<128x128xf32>, vector<128x128xf32> -> vector<128x128xf32>
    %cst_17 = arith.constant 0.899999976 : f32
    %24 = vector.broadcast %cst_17 : f32 to vector<128x128xf32>
    %25 = arith.mulf %24, %23 : vector<128x128xf32>
    %26 = arith.addf %25, %22 : vector<128x128xf32>
    %cst_18 = arith.constant dense<0.000000e+00> : vector<128x128xf32>
    %27 = tpu.matmul %3, %26, %cst_18 {dimension_numbers = #tpu.dot_dimension_numbers<[1], [0], [0], [1], [0, 0, 1, 1], [], []>} : vector<128x128xf32>, vector<128x128xf32>, vector<128x128xf32> -> vector<128x128xf32>
    %cst_19 = arith.constant 0.899999976 : f32
    %28 = vector.broadcast %cst_19 : f32 to vector<128x128xf32>
    %29 = arith.mulf %28, %27 : vector<128x128xf32>
    %30 = arith.addf %29, %22 : vector<128x128xf32>
    %cst_20 = arith.constant dense<0.000000e+00> : vector<8x128xf32>
    %31 = tpu.matmul %5, %30, %cst_20 {dimension_numbers = #tpu.dot_dimension_numbers<[1], [0], [0], [1], [0, 0, 1, 1], [], []>} : vector<8x128xf32>, vector<128x128xf32>, vector<8x128xf32> -> vector<8x128xf32>
    %cst_21 = arith.constant dense<0.000000e+00> : vector<8x128xf32>
    %32 = tpu.matmul %31, %8, %cst_21 {dimension_numbers = #tpu.dot_dimension_numbers<[1], [0], [0], [1], [0, 0, 1, 1], [], []>} : vector<8x128xf32>, vector<128x128xf32>, vector<8x128xf32> -> vector<8x128xf32>
    %33 = vector.broadcast %12 : vector<1x128xf32> to vector<8x128xf32>
    %34 = arith.addf %32, %33 : vector<8x128xf32>
    %c0_22 = arith.constant 0 : index
    %c0_23 = arith.constant 0 : index
    %c0_24 = arith.constant 0 : index
    %35 = vector.load %arg3[%c0_22, %c0_23, %c0_24] : memref<1x8x128xf32, #tpu.memory_space<vmem>>, vector<1x8x128xf32>
    %36 = vector.shape_cast %35 : vector<1x8x128xf32> to vector<8x128xf32>
    %37 = vector.shape_cast %34 : vector<8x128xf32> to vector<1x8x128xf32>
    tpu.vector_store %arg3[%c0_22, %c0_23, %c0_24], %37 {strides = array<i32>} : memref<1x8x128xf32, #tpu.memory_space<vmem>>, vector<1x8x128xf32>,
    return
  }
  func.func @transform_0(%arg0: i32) -> (i32, i32, i32) {
    %c0_i32 = arith.constant 0 : i32
    %c0_i32_0 = arith.constant 0 : i32
    %c0_i32_1 = arith.constant 0 : i32
    return %arg0, %c0_i32, %c0_i32_0 : i32, i32, i32
  }
  func.func @transform_1(%arg0: i32) -> (i32, i32) {
    %c0_i32 = arith.constant 0 : i32
    %c0_i32_0 = arith.constant 0 : i32
    %c0_i32_1 = arith.constant 0 : i32
    return %c0_i32, %c0_i32_0 : i32, i32
  }
  func.func @transform_2(%arg0: i32) -> (i32, i32, i32) {
    %c0_i32 = arith.constant 0 : i32
    %c0_i32_0 = arith.constant 0 : i32
    %c0_i32_1 = arith.constant 0 : i32
    return %arg0, %c0_i32, %c0_i32_0 : i32, i32, i32
  }
}

</mosaic_0001>

<llo_original>
// kernel: tpu_custom_call.1
$region0: #{tpu_custom_call.1}
  #allocation0 [shape = 'u32[]', space=smem, size = 0x4, offset = 0x4, fixed_abs, tag = 'smem constant byte address 0x4 - core index']
  #allocation1 [shape = 'u32[144,128]{1,0:T(1,128)}', space=vmem, size = 0x12000, scoped, tag = 'internal scratch']
  %s0 = inlined_call_operand.hbm [shape: f32[8,264,128], index: 0, kind: input, shape index: {}]
  %s1 = inlined_call_operand.hbm [shape: f32[392,128], index: 1, kind: input, shape index: {}]
  %s2 = inlined_call_operand.hbm [shape: f32[8,8,128], index: 2, kind: output, shape index: {}]
  %s3 = sld [smem:[#allocation0]]
  $region49: #{tpu_custom_call.1} parent=0
    _
  %s5 = ssub.s32 1, %s3
  %s6 = scalar_select 0, %s5, %s3
  $region1: #{tpu_custom_call.1} parent=0
    #allocation2 [shape = 'u8[270336]{0}', space=vmem, size = 0x42000, scoped, tag = 'input window, operand 0']
    #allocation3 [shape = 's32[2]{0}', space=sflag, size = 0x8, scoped, tag = 'scoped memory for tpu_custom_call.1']
    #allocation4 [shape = 's32[2]{0}', space=sflag, size = 0x8, scoped, tag = 'scoped memory for tpu_custom_call.1']
    #allocation5 [shape = 'u8[200704]{0}', space=vmem, size = 0x31000, scoped, tag = 'input window, operand 1, single buffered']
    #allocation6 [shape = 's32[1]{0}', space=sflag, size = 0x4, scoped, tag = 'scoped memory for tpu_custom_call.1']
    #allocation7 [shape = 'u8[8192]{0}', space=vmem, size = 0x2000, scoped, tag = 'output window, operand 0']
    %7 = vsyncpa [#allocation3], 0
    %s8 = scalar_lea.sflag [#allocation3], 1
    %9 = vsyncpa %s8, 0
    %10 = vsyncpa [#allocation6], 0
    %11 = vsyncpa [#allocation4], 0
    %s12 = scalar_lea.sflag [#allocation4], 1
    %13 = vsyncpa %s12, 0
    loop: start=0, step=1, limit=10
    $region2: #{tpu_custom_call.1} parent=1 // loop_pre_header
      _
    $region3: #{tpu_custom_call.1} parent=1 // loop_header
      %s15 = sphi 0, %s19
      %p16 = scmp.ge.s32.totalorder %s15, 10
      %s25 = sphi 0, %s27
      %s28 = sphi 0, %s25
      %s29 = sphi 0, %s28
      %s45 = sphi 0, %s29
      %s49 = sphi 0, %s49
      %s51 = sphi 0, %s49
      %s52 = sphi 0, %s51
      %s66 = sphi 0, %s52
      %s72 = sphi 0, %s74
      %s75 = sphi 0, %s72
      %s76 = sphi 0, %s75
      %s92 = sphi 0, %s76
    $region4: #{tpu_custom_call.1} parent=1 // loop_header_branch
      %18 = sbr.rel (%p16) target = $region8
    $region5: #{tpu_custom_call.1} parent=1 // loop_body
      %s20 = ssub.s32 %s15, 1
      %s21 = ssub.s32 %s15, 2
      %s22 = sadd.s32 %s15, 1
      %s23 = ssub.s32 %s15, %s22
      %p24 = scmp.eq.s32.totalorder %s23, 0
      %s26 = sadd.s32 %s25, 1
      %s27 = scalar_select %p24, %s25, %s26
      %p30 = pneg %p24
      %p31 = scmp.eq.s32.totalorder %s15, 7
      %p32 = por %p30, %p31
      %p33 = scmp.ne.s32.totalorder %s25, %s28
      %p34 = scmp.eq.s32.totalorder %s15, 0
      %p35 = por %p33, %p34
      %p36 = scmp.ne.s32.totalorder %s25, %s28
      %p37 = scmp.eq.s32.totalorder %s20, 7
      %p38 = por %p36, %p37
      %p39 = scmp.ne.s32.totalorder %s28, %s29
      %p40 = scmp.eq.s32.totalorder %s20, 0
      %p41 = por %p39, %p40
      %p42 = scmp.ne.s32.totalorder %s28, %s29
      %p43 = scmp.eq.s32.totalorder %s21, 7
      %p44 = por %p42, %p43
      %p46 = scmp.ne.s32.totalorder %s29, %s45
      %p47 = scmp.eq.s32.totalorder %s21, 0
      %p48 = por %p46, %p47
      %s50 = sadd.s32 %s49, 1
      %p53 = scmp.eq.s32.totalorder %s15, 7
      %p54 = scmp.ne.s32.totalorder %s49, %s51
      %p55 = scmp.eq.s32.totalorder %s15, 0
      %p56 = por %p54, %p55
      %p57 = scmp.ne.s32.totalorder %s49, %s51
      %p58 = scmp.eq.s32.totalorder %s20, 7
      %p59 = por %p57, %p58
      %p60 = scmp.ne.s32.totalorder %s51, %s52
      %p61 = scmp.eq.s32.totalorder %s20, 0
      %p62 = por %p60, %p61
      %p63 = scmp.ne.s32.totalorder %s51, %s52
      %p64 = scmp.eq.s32.totalorder %s21, 7
      %p65 = por %p63, %p64
      %p67 = scmp.ne.s32.totalorder %s52, %s66
      %p68 = scmp.eq.s32.totalorder %s21, 0
      %p69 = por %p67, %p68
      %s70 = ssub.s32 %s15, %s22
      %p71 = scmp.eq.s32.totalorder %s70, 0
      %s73 = sadd.s32 %s72, 1
      %s74 = scalar_select %p71, %s72, %s73
      %p77 = pneg %p71
      %p78 = scmp.eq.s32.totalorder %s15, 7
      %p79 = por %p77, %p78
      %p80 = scmp.ne.s32.totalorder %s72, %s75
      %p81 = scmp.eq.s32.totalorder %s15, 0
      %p82 = por %p80, %p81
      %p83 = scmp.ne.s32.totalorder %s72, %s75
      %p84 = scmp.eq.s32.totalorder %s20, 7
      %p85 = por %p83, %p84
      %p86 = scmp.ne.s32.totalorder %s75, %s76
      %p87 = scmp.eq.s32.totalorder %s20, 0
      %p88 = por %p86, %p87
      %p89 = scmp.ne.s32.totalorder %s75, %s76
      %p90 = scmp.eq.s32.totalorder %s21, 7
      %p91 = por %p89, %p90
      %p93 = scmp.ne.s32.totalorder %s76, %s92
      %p94 = scmp.eq.s32.totalorder %s21, 0
      %p95 = por %p93, %p94
      %p96 = scmp.le.s32.totalorder 1, %s15
      %p97 = scmp.lt.s32.totalorder %s15, 9
      %p98 = pnand %p96, %p97
      %p99 = pneg %p98
      // Predicated region
      $region9: #{tpu_custom_call.1} parent=5 // pred_check
        _
      $region10: #{tpu_custom_call.1} parent=5 // pred_check_branch
        %101 = sbr.rel (%p98) target = $region12
      $region11: #{tpu_custom_call.1} parent=5 // pred_region
        %s102 = ssub.s32 %s15, 1
        // Predicated region
        $region13: #{tpu_custom_call.1} parent=11 // pred_check
          %p103 = pneg %p62
        $region14: #{tpu_custom_call.1} parent=11 // pred_check_branch
          %105 = sbr.rel (%p103) target = $region16
        $region15: #{tpu_custom_call.1} parent=11 // pred_region
          %s107 = ssub.s32 6272, 6272
          %108 = vsyncadd [#allocation6], %s107
          %s109 = sshll.u32 [#allocation5], 4
          %s110 = int_to_ptr.vmem [resolvable:$true] %s109
          %115 = dma.hbm_to_vmem [thread:$0]  %s1, 6272, %s110, [#allocation6], 128, 128, 8
        $region16: #{tpu_custom_call.1} parent=11 // pred_fallthru
          _
      $region12: #{tpu_custom_call.1} parent=5 // pred_fallthru
        _
      %p116 = scmp.lt.s32.totalorder %s15, 8
      // Predicated region
      $region17: #{tpu_custom_call.1} parent=5 // pred_check
        %p117 = pneg %p116
      $region18: #{tpu_custom_call.1} parent=5 // pred_check_branch
        %119 = sbr.rel (%p117) target = $region20
      $region19: #{tpu_custom_call.1} parent=5 // pred_region
        // Predicated region
        $region21: #{tpu_custom_call.1} parent=19 // pred_check
          %p120 = pneg %p35
        $region22: #{tpu_custom_call.1} parent=19 // pred_check_branch
          %122 = sbr.rel (%p120) target = $region24
        $region23: #{tpu_custom_call.1} parent=19 // pred_region
          %s123 = sand.u32 %s25, 1
          %s124 = scalar_lea.sflag [#allocation3], %s123
          %s125 = sand.u32 %s25, 1
          %s126 = smul.addr %s125, 264
          %s127 = scalar_lea.vmem [#allocation2], %s126
          %s129 = ssub.s32 4224, 4224
          %130 = vsyncadd %s124, %s129
          %s131 = smul.addr %s15, 33
          %s132 = smul.addr %s131, 128
          %s133 = scalar_lea.hbm %s0, %s132
          %s134 = sshll.u32 %s127, 4
          %s135 = int_to_ptr.vmem [resolvable:$true] %s134
          %140 = dma.hbm_to_vmem [thread:$0]  %s133, 4224, %s135, %s124, 128, 128, 8
        $region24: #{tpu_custom_call.1} parent=19 // pred_fallthru
          _
      $region20: #{tpu_custom_call.1} parent=5 // pred_fallthru
        _
      %p141 = scmp.le.s32.totalorder 1, %s15
      %p142 = scmp.lt.s32.totalorder %s15, 9
      %p143 = pnand %p141, %p142
      %p144 = pneg %p143
      // Predicated region
      $region25: #{tpu_custom_call.1} parent=5 // pred_check
        _
      $region26: #{tpu_custom_call.1} parent=5 // pred_check_branch
        %146 = sbr.rel (%p143) target = $region28
      $region27: #{tpu_custom_call.1} parent=5 // pred_region
        %s147 = ssub.s32 %s15, 1
        %s148 = sand.u32 %s28, 1
        %s149 = scalar_lea.sflag [#allocation3], %s148
        %s150 = sand.u32 %s28, 1
        %s151 = smul.addr %s150, 264
        %s152 = scalar_lea.vmem [#allocation2], %s151
        // Predicated region
        $region29: #{tpu_custom_call.1} parent=27 // pred_check
          %p153 = pneg %p41
        $region30: #{tpu_custom_call.1} parent=27 // pred_check_branch
          %155 = sbr.rel (%p153) target = $region32
        $region31: #{tpu_custom_call.1} parent=27 // pred_region
          %156 = dma.done %s149, 4224
        $region32: #{tpu_custom_call.1} parent=27 // pred_fallthru
          _
        // Predicated region
        $region33: #{tpu_custom_call.1} parent=27 // pred_check
          %p157 = pneg %p62
        $region34: #{tpu_custom_call.1} parent=27 // pred_check_branch
          %159 = sbr.rel (%p157) target = $region36
        $region35: #{tpu_custom_call.1} parent=27 // pred_region
          %160 = dma.done [#allocation6], 6272
        $region36: #{tpu_custom_call.1} parent=27 // pred_fallthru
          _
        %s161 = sand.u32 %s28, 1
        %s162 = scalar_lea.sflag [#allocation3], %s161
        %s163 = sand.u32 %s28, 1
        %s164 = smul.addr %s163, 264
        %s165 = scalar_lea.vmem [#allocation2], %s164
        %p166 = pneg %p41
        %p167 = pneg %p38
        %p168 = pneg %p62
        %p169 = pneg %p59
        %p170 = pneg %p88
        %p171 = pneg %p85
        %s172 = sand.u32 %s75, 1
        %s173 = scalar_lea.sflag [#allocation4], %s172
        %s174 = sand.u32 %s75, 1
        %s175 = smul.addr %s174, 8
        %s176 = scalar_lea.vmem [#allocation7], %s175
        %v177 = vld [vmem:[%s152] sm:$0xff]
        %v178 = vld [vmem:[%s152 + $0x8] sm:$0xff]
        %v179 = vld [vmem:[%s152 + $0x10] sm:$0xff]
        %v180 = vld [vmem:[%s152 + $0x18] sm:$0xff]
        %v181 = vld [vmem:[%s152 + $0x20] sm:$0xff]
        %v182 = vld [vmem:[%s152 + $0x28] sm:$0xff]
        %v183 = vld [vmem:[%s152 + $0x30] sm:$0xff]
        %v184 = vld [vmem:[%s152 + $0x38] sm:$0xff]
        %v185 = vld [vmem:[%s152 + $0x40] sm:$0xff]
        %v186 = vld [vmem:[%s152 + $0x48] sm:$0xff]
        %v187 = vld [vmem:[%s152 + $0x50] sm:$0xff]
        %v188 = vld [vmem:[%s152 + $0x58] sm:$0xff]
        %v189 = vld [vmem:[%s152 + $0x60] sm:$0xff]
        %v190 = vld [vmem:[%s152 + $0x68] sm:$0xff]
        %v191 = vld [vmem:[%s152 + $0x70] sm:$0xff]
        %v192 = vld [vmem:[%s152 + $0x78] sm:$0xff]
        %v193 = vld [vmem:[%s152 + $0x80] sm:$0xff]
        %v194 = vld [vmem:[%s152 + $0x88] sm:$0xff]
        %v195 = vld [vmem:[%s152 + $0x90] sm:$0xff]
        %v196 = vld [vmem:[%s152 + $0x98] sm:$0xff]
        %v197 = vld [vmem:[%s152 + $0xa0] sm:$0xff]
        %v198 = vld [vmem:[%s152 + $0xa8] sm:$0xff]
        %v199 = vld [vmem:[%s152 + $0xb0] sm:$0xff]
        %v200 = vld [vmem:[%s152 + $0xb8] sm:$0xff]
        %v201 = vld [vmem:[%s152 + $0xc0] sm:$0xff]
        %v202 = vld [vmem:[%s152 + $0xc8] sm:$0xff]
        %v203 = vld [vmem:[%s152 + $0xd0] sm:$0xff]
        %v204 = vld [vmem:[%s152 + $0xd8] sm:$0xff]
        %v205 = vld [vmem:[%s152 + $0xe0] sm:$0xff]
        %v206 = vld [vmem:[%s152 + $0xe8] sm:$0xff]
        %v207 = vld [vmem:[%s152 + $0xf0] sm:$0xff]
        %v208 = vld [vmem:[%s152 + $0xf8] sm:$0xff]
        %v209 = vld [vmem:[%s152 + $0x100] sm:$0xff]
        %v210 = vld [vmem:[#allocation5] sm:$0xff]
        %v211 = vld [vmem:[#allocation5 + $0x8] sm:$0xff]
        %v212 = vld [vmem:[#allocation5 + $0x10] sm:$0xff]
        %v213 = vld [vmem:[#allocation5 + $0x18] sm:$0xff]
        %v214 = vld [vmem:[#allocation5 + $0x20] sm:$0xff]
        %v215 = vld [vmem:[#allocation5 + $0x28] sm:$0xff]
        %v216 = vld [vmem:[#allocation5 + $0x30] sm:$0xff]
        %v217 = vld [vmem:[#allocation5 + $0x38] sm:$0xff]
        %v218 = vld [vmem:[#allocation5 + $0x40] sm:$0xff]
        %v219 = vld [vmem:[#allocation5 + $0x48] sm:$0xff]
        %v220 = vld [vmem:[#allocation5 + $0x50] sm:$0xff]
        %v221 = vld [vmem:[#allocation5 + $0x58] sm:$0xff]
        %v222 = vld [vmem:[#allocation5 + $0x60] sm:$0xff]
        %v223 = vld [vmem:[#allocation5 + $0x68] sm:$0xff]
        %v224 = vld [vmem:[#allocation5 + $0x70] sm:$0xff]
        %v225 = vld [vmem:[#allocation5 + $0x78] sm:$0xff]
        %v226 = vld [vmem:[#allocation5 + $0x80] sm:$0xff]
        %v227 = vld [vmem:[#allocation5 + $0x88] sm:$0xff]
        %v228 = vld [vmem:[#allocation5 + $0x90] sm:$0xff]
        %v229 = vld [vmem:[#allocation5 + $0x98] sm:$0xff]
        %v230 = vld [vmem:[#allocation5 + $0xa0] sm:$0xff]
        %v231 = vld [vmem:[#allocation5 + $0xa8] sm:$0xff]
        %v232 = vld [vmem:[#allocation5 + $0xb0] sm:$0xff]
        %v233 = vld [vmem:[#allocation5 + $0xb8] sm:$0xff]
        %v234 = vld [vmem:[#allocation5 + $0xc0] sm:$0xff]
        %v235 = vld [vmem:[#allocation5 + $0xc8] sm:$0xff]
        %v236 = vld [vmem:[#allocation5 + $0xd0] sm:$0xff]
        %v237 = vld [vmem:[#allocation5 + $0xd8] sm:$0xff]
        %v238 = vld [vmem:[#allocation5 + $0xe0] sm:$0xff]
        %v239 = vld [vmem:[#allocation5 + $0xe8] sm:$0xff]
        %v240 = vld [vmem:[#allocation5 + $0xf0] sm:$0xff]
        %v241 = vld [vmem:[#allocation5 + $0xf8] sm:$0xff]
        %v242 = vld [vmem:[#allocation5 + $0x100] sm:$0xff]
        %v243 = vld [vmem:[#allocation5 + $0x108] sm:$0xff]
        %v244 = vld [vmem:[#allocation5 + $0x110] sm:$0xff]
        %v245 = vld [vmem:[#allocation5 + $0x118] sm:$0xff]
        %v246 = vld [vmem:[#allocation5 + $0x120] sm:$0xff]
        %v247 = vld [vmem:[#allocation5 + $0x128] sm:$0xff]
        %v248 = vld [vmem:[#allocation5 + $0x130] sm:$0xff]
        %v249 = vld [vmem:[#allocation5 + $0x138] sm:$0xff]
        %v250 = vld [vmem:[#allocation5 + $0x140] sm:$0xff]
        %v251 = vld [vmem:[#allocation5 + $0x148] sm:$0xff]
        %v252 = vld [vmem:[#allocation5 + $0x150] sm:$0xff]
        %v253 = vld [vmem:[#allocation5 + $0x158] sm:$0xff]
        %v254 = vld [vmem:[#allocation5 + $0x160] sm:$0xff]
        %v255 = vld [vmem:[#allocation5 + $0x168] sm:$0xff]
        %v256 = vld [vmem:[#allocation5 + $0x170] sm:$0xff]
        %v257 = vld [vmem:[#allocation5 + $0x178] sm:$0xff]
        %v258 = vld [vmem:[#allocation5 + $0x180] sm:$0xff]
        %v259 = vlaneseq
        %v260 = vshrl.u32 %v259, 7
        %v261 = vsub.s32 0, %v260
        %v262 = vrot.slane %v258, %v261
        %263 = vmatprep.subr.mxu0 0.0
        %264 = vmatpush1.msra.mxu0 %v210
        %265 = vmatprep.subr.mxu0 0.0
        %266 = vmatpush1.msra.mxu0 %v211
        %267 = vmatprep.subr.mxu0 0.0
        %268 = vmatpush1.msra.mxu0 %v212
        %269 = vmatprep.subr.mxu0 0.0
        %270 = vmatpush1.msra.mxu0 %v213
        %271 = vmatprep.subr.mxu0 0.0
        %272 = vmatpush1.msra.mxu0 %v214
        %273 = vmatprep.subr.mxu0 0.0
        %274 = vmatpush1.msra.mxu0 %v215
        %275 = vmatprep.subr.mxu0 0.0
        %276 = vmatpush1.msra.mxu0 %v216
        %277 = vmatprep.subr.mxu0 0.0
        %278 = vmatpush1.msra.mxu0 %v217
        %279 = vmatprep.subr.mxu0 0.0
        %280 = vmatpush1.msra.mxu0 %v218
        %281 = vmatprep.subr.mxu0 0.0
        %282 = vmatpush1.msra.mxu0 %v219
        %283 = vmatprep.subr.mxu0 0.0
        %284 = vmatpush1.msra.mxu0 %v220
        %285 = vmatprep.subr.mxu0 0.0
        %286 = vmatpush1.msra.mxu0 %v221
        %287 = vmatprep.subr.mxu0 0.0
        %288 = vmatpush1.msra.mxu0 %v222
        %289 = vmatprep.subr.mxu0 0.0
        %290 = vmatpush1.msra.mxu0 %v223
        %291 = vmatprep.subr.mxu0 0.0
        %292 = vmatpush1.msra.mxu0 %v224
        %293 = vmatprep.subr.mxu0 0.0
        %294 = vmatpush1.msra.mxu0 %v225
        %295 = vmatprep.subr.mxu0 0.0
        %296 = vmatpush1.msra.mxu0 0.0
        %297 = vmatprep.subr.mxu0 0.0
        %298 = vmatpush1.msra.mxu0 0.0
        %299 = vmatprep.subr.mxu0 0.0
        %300 = vmatpush1.msra.mxu0 0.0
        %301 = vmatprep.subr.mxu0 0.0
        %302 = vmatpush1.msra.mxu0 0.0
        %303 = vmatprep.subr.mxu0 0.0
        %304 = vmatpush1.msra.mxu0 0.0
        %305 = vmatprep.subr.mxu0 0.0
        %306 = vmatpush1.msra.mxu0 0.0
        %307 = vmatprep.subr.mxu0 0.0
        %308 = vmatpush1.msra.mxu0 0.0
        %309 = vmatprep.subr.mxu0 0.0
        %310 = vmatpush1.msra.mxu0 0.0
        %311 = vmatprep.subr.mxu0 0.0
        %312 = vmatpush1.msra.mxu0 0.0
        %313 = vmatprep.subr.mxu0 0.0
        %314 = vmatpush1.msra.mxu0 0.0
        %315 = vmatprep.subr.mxu0 0.0
        %316 = vmatpush1.msra.mxu0 0.0
        %317 = vmatprep.subr.mxu0 0.0
        %318 = vmatpush1.msra.mxu0 0.0
        %319 = vmatprep.subr.mxu0 0.0
        %320 = vmatpush1.msra.mxu0 0.0
        %321 = vmatprep.subr.mxu0 0.0
        %322 = vmatpush1.msra.mxu0 0.0
        %323 = vmatprep.subr.mxu0 0.0
        %324 = vmatpush1.msra.mxu0 0.0
        %325 = vmatprep.subr.mxu0 0.0
        %326 = vmatpush1.msra.mxu0 0.0
        %327 = vmatprep.mubr.f32.mxu0 0.0
        %328 = vmatmul.mubr.f32.gmra.mrb[0].mxu0 %v177
        %v329 = vpop.f32.mrb[0].mxu0
        %v330 = vadd.f32 %v262, %v329
        %v331 = vpop.f32.mrb[0].mxu0
        %332 = vmatprep.mubr.f32.mxu0 0.0
        %333 = vmatmul.mubr.f32.gmra.mrb[0].mxu0 %v178
        %v334 = vpop.f32.mrb[0].mxu0
        %v335 = vadd.f32 %v262, %v334
        %v336 = vpop.f32.mrb[0].mxu0
        %337 = vmatprep.mubr.f32.mxu0 0.0
        %338 = vmatmul.mubr.f32.gmra.mrb[0].mxu0 %v179
        %v339 = vpop.f32.mrb[0].mxu0
        %v340 = vadd.f32 %v262, %v339
        %v341 = vpop.f32.mrb[0].mxu0
        %342 = vmatprep.mubr.f32.mxu0 0.0
        %343 = vmatmul.mubr.f32.gmra.mrb[0].mxu0 %v180
        %v344 = vpop.f32.mrb[0].mxu0
        %v345 = vadd.f32 %v262, %v344
        %v346 = vpop.f32.mrb[0].mxu0
        %347 = vmatprep.mubr.f32.mxu0 0.0
        %348 = vmatmul.mubr.f32.gmra.mrb[0].mxu0 %v181
        %v349 = vpop.f32.mrb[0].mxu0
        %v350 = vadd.f32 %v262, %v349
        %v351 = vpop.f32.mrb[0].mxu0
        %352 = vmatprep.mubr.f32.mxu0 0.0
        %353 = vmatmul.mubr.f32.gmra.mrb[0].mxu0 %v182
        %v354 = vpop.f32.mrb[0].mxu0
        %v355 = vadd.f32 %v262, %v354
        %v356 = vpop.f32.mrb[0].mxu0
        %357 = vmatprep.mubr.f32.mxu0 0.0
        %358 = vmatmul.mubr.f32.gmra.mrb[0].mxu0 %v183
        %v359 = vpop.f32.mrb[0].mxu0
        %v360 = vadd.f32 %v262, %v359
        %v361 = vpop.f32.mrb[0].mxu0
        %362 = vmatprep.mubr.f32.mxu0 0.0
        %363 = vmatmul.mubr.f32.gmra.mrb[0].mxu0 %v184
        %v364 = vpop.f32.mrb[0].mxu0
        %v365 = vadd.f32 %v262, %v364
        %v366 = vpop.f32.mrb[0].mxu0
        %367 = vmatprep.mubr.f32.mxu0 0.0
        %368 = vmatmul.mubr.f32.gmra.mrb[0].mxu0 %v185
        %v369 = vpop.f32.mrb[0].mxu0
        %v370 = vadd.f32 %v262, %v369
        %v371 = vpop.f32.mrb[0].mxu0
        %372 = vmatprep.mubr.f32.mxu0 0.0
        %373 = vmatmul.mubr.f32.gmra.mrb[0].mxu0 %v186
        %v374 = vpop.f32.mrb[0].mxu0
        %v375 = vadd.f32 %v262, %v374
        %v376 = vpop.f32.mrb[0].mxu0
        %377 = vmatprep.mubr.f32.mxu0 0.0
        %378 = vmatmul.mubr.f32.gmra.mrb[0].mxu0 %v187
        %v379 = vpop.f32.mrb[0].mxu0
        %v380 = vadd.f32 %v262, %v379
        %v381 = vpop.f32.mrb[0].mxu0
        %382 = vmatprep.mubr.f32.mxu0 0.0
        %383 = vmatmul.mubr.f32.gmra.mrb[0].mxu0 %v188
        %v384 = vpop.f32.mrb[0].mxu0
        %v385 = vadd.f32 %v262, %v384
        %v386 = vpop.f32.mrb[0].mxu0
        %387 = vmatprep.mubr.f32.mxu0 0.0
        %388 = vmatmul.mubr.f32.gmra.mrb[0].mxu0 %v189
        %v389 = vpop.f32.mrb[0].mxu0
        %v390 = vadd.f32 %v262, %v389
        %v391 = vpop.f32.mrb[0].mxu0
        %392 = vmatprep.mubr.f32.mxu0 0.0
        %393 = vmatmul.mubr.f32.gmra.mrb[0].mxu0 %v190
        %v394 = vpop.f32.mrb[0].mxu0
        %v395 = vadd.f32 %v262, %v394
        %v396 = vpop.f32.mrb[0].mxu0
        %397 = vmatprep.mubr.f32.mxu0 0.0
        %398 = vmatmul.mubr.f32.gmra.mrb[0].mxu0 %v191
        %v399 = vpop.f32.mrb[0].mxu0
        %v400 = vadd.f32 %v262, %v399
        %v401 = vpop.f32.mrb[0].mxu0
        %402 = vmatprep.mubr.f32.mxu0 0.0
        %403 = vmatmul.mubr.f32.gmra.mrb[0].mxu0 %v192
        %v404 = vpop.f32.mrb[0].mxu0
        %v405 = vadd.f32 %v262, %v404
        %v406 = vpop.f32.mrb[0].mxu0
        %407 = vdwg.mxu0
        %v408 = vmax.f32 %v330, 0.0
        %v409 = vmax.f32 %v335, 0.0
        %v410 = vmax.f32 %v340, 0.0
        %v411 = vmax.f32 %v345, 0.0
        %v412 = vmax.f32 %v350, 0.0
        %v413 = vmax.f32 %v355, 0.0
        %v414 = vmax.f32 %v360, 0.0
        %v415 = vmax.f32 %v365, 0.0
        %v416 = vmax.f32 %v370, 0.0
        %v417 = vmax.f32 %v375, 0.0
        %v418 = vmax.f32 %v380, 0.0
        %v419 = vmax.f32 %v385, 0.0
        %v420 = vmax.f32 %v390, 0.0
        %v421 = vmax.f32 %v395, 0.0
        %v422 = vmax.f32 %v400, 0.0
        %v423 = vmax.f32 %v405, 0.0
        %v424 = vlaneseq
        %v425 = vshrl.u32 %v424, 7
        %v426 = vsub.s32 1, %v425
        %v427 = vrot.slane %v258, %v426
        %428 = vmatprep.subr.mxu0 0.0
        %429 = vmatpush1.msra.mxu0 %v226
        %430 = vmatprep.subr.mxu0 0.0
        %431 = vmatpush1.msra.mxu0 %v227
        %432 = vmatprep.subr.mxu0 0.0
        %433 = vmatpush1.msra.mxu0 %v228
        %434 = vmatprep.subr.mxu0 0.0
        %435 = vmatpush1.msra.mxu0 %v229
        %436 = vmatprep.subr.mxu0 0.0
        %437 = vmatpush1.msra.mxu0 %v230
        %438 = vmatprep.subr.mxu0 0.0
        %439 = vmatpush1.msra.mxu0 %v231
        %440 = vmatprep.subr.mxu0 0.0
        %441 = vmatpush1.msra.mxu0 %v232
        %442 = vmatprep.subr.mxu0 0.0
        %443 = vmatpush1.msra.mxu0 %v233
        %444 = vmatprep.subr.mxu0 0.0
        %445 = vmatpush1.msra.mxu0 %v234
        %446 = vmatprep.subr.mxu0 0.0
        %447 = vmatpush1.msra.mxu0 %v235
        %448 = vmatprep.subr.mxu0 0.0
        %449 = vmatpush1.msra.mxu0 %v236
        %450 = vmatprep.subr.mxu0 0.0
        %451 = vmatpush1.msra.mxu0 %v237
        %452 = vmatprep.subr.mxu0 0.0
        %453 = vmatpush1.msra.mxu0 %v238
        %454 = vmatprep.subr.mxu0 0.0
        %455 = vmatpush1.msra.mxu0 %v239
        %456 = vmatprep.subr.mxu0 0.0
        %457 = vmatpush1.msra.mxu0 %v240
        %458 = vmatprep.subr.mxu0 0.0
        %459 = vmatpush1.msra.mxu0 %v241
        %460 = vmatprep.subr.mxu0 0.0
        %461 = vmatpush1.msra.mxu0 0.0
        %462 = vmatprep.subr.mxu0 0.0
        %463 = vmatpush1.msra.mxu0 0.0
        %464 = vmatprep.subr.mxu0 0.0
        %465 = vmatpush1.msra.mxu0 0.0
        %466 = vmatprep.subr.mxu0 0.0
        %467 = vmatpush1.msra.mxu0 0.0
        %468 = vmatprep.subr.mxu0 0.0
        %469 = vmatpush1.msra.mxu0 0.0
        %470 = vmatprep.subr.mxu0 0.0
        %471 = vmatpush1.msra.mxu0 0.0
        %472 = vmatprep.subr.mxu0 0.0
        %473 = vmatpush1.msra.mxu0 0.0
        %474 = vmatprep.subr.mxu0 0.0
        %475 = vmatpush1.msra.mxu0 0.0
        %476 = vmatprep.subr.mxu0 0.0
        %477 = vmatpush1.msra.mxu0 0.0
        %478 = vmatprep.subr.mxu0 0.0
        %479 = vmatpush1.msra.mxu0 0.0
        %480 = vmatprep.subr.mxu0 0.0
        %481 = vmatpush1.msra.mxu0 0.0
        %482 = vmatprep.subr.mxu0 0.0
        %483 = vmatpush1.msra.mxu0 0.0
        %484 = vmatprep.subr.mxu0 0.0
        %485 = vmatpush1.msra.mxu0 0.0
        %486 = vmatprep.subr.mxu0 0.0
        %487 = vmatpush1.msra.mxu0 0.0
        %488 = vmatprep.subr.mxu0 0.0
        %489 = vmatpush1.msra.mxu0 0.0
        %490 = vmatprep.subr.mxu0 0.0
        %491 = vmatpush1.msra.mxu0 0.0
        %492 = vmatprep.mubr.f32.mxu0 0.0
        %493 = vmatmul.mubr.f32.gmra.mrb[0].mxu0 %v408
        %v494 = vpop.f32.mrb[0].mxu0
        %v495 = vadd.f32 %v427, %v494
        %v496 = vpop.f32.mrb[0].mxu0
        %497 = vmatprep.mubr.f32.mxu0 0.0
        %498 = vmatmul.mubr.f32.gmra.mrb[0].mxu0 %v409
        %v499 = vpop.f32.mrb[0].mxu0
        %v500 = vadd.f32 %v427, %v499
        %v501 = vpop.f32.mrb[0].mxu0
        %502 = vmatprep.mubr.f32.mxu0 0.0
        %503 = vmatmul.mubr.f32.gmra.mrb[0].mxu0 %v410
        %v504 = vpop.f32.mrb[0].mxu0
        %v505 = vadd.f32 %v427, %v504
        %v506 = vpop.f32.mrb[0].mxu0
        %507 = vmatprep.mubr.f32.mxu0 0.0
        %508 = vmatmul.mubr.f32.gmra.mrb[0].mxu0 %v411
        %v509 = vpop.f32.mrb[0].mxu0
        %v510 = vadd.f32 %v427, %v509
        %v511 = vpop.f32.mrb[0].mxu0
        %512 = vmatprep.mubr.f32.mxu0 0.0
        %513 = vmatmul.mubr.f32.gmra.mrb[0].mxu0 %v412
        %v514 = vpop.f32.mrb[0].mxu0
        %v515 = vadd.f32 %v427, %v514
        %v516 = vpop.f32.mrb[0].mxu0
        %517 = vmatprep.mubr.f32.mxu0 0.0
        %518 = vmatmul.mubr.f32.gmra.mrb[0].mxu0 %v413
        %v519 = vpop.f32.mrb[0].mxu0
        %v520 = vadd.f32 %v427, %v519
        %v521 = vpop.f32.mrb[0].mxu0
        %522 = vmatprep.mubr.f32.mxu0 0.0
        %523 = vmatmul.mubr.f32.gmra.mrb[0].mxu0 %v414
        %v524 = vpop.f32.mrb[0].mxu0
        %v525 = vadd.f32 %v427, %v524
        %v526 = vpop.f32.mrb[0].mxu0
        %527 = vmatprep.mubr.f32.mxu0 0.0
        %528 = vmatmul.mubr.f32.gmra.mrb[0].mxu0 %v415
        %v529 = vpop.f32.mrb[0].mxu0
        %v530 = vadd.f32 %v427, %v529
        %v531 = vpop.f32.mrb[0].mxu0
        %532 = vmatprep.mubr.f32.mxu0 0.0
        %533 = vmatmul.mubr.f32.gmra.mrb[0].mxu0 %v416
        %v534 = vpop.f32.mrb[0].mxu0
        %v535 = vadd.f32 %v427, %v534
        %v536 = vpop.f32.mrb[0].mxu0
        %537 = vmatprep.mubr.f32.mxu0 0.0
        %538 = vmatmul.mubr.f32.gmra.mrb[0].mxu0 %v417
        %v539 = vpop.f32.mrb[0].mxu0
        %v540 = vadd.f32 %v427, %v539
        %v541 = vpop.f32.mrb[0].mxu0
        %542 = vmatprep.mubr.f32.mxu0 0.0
        %543 = vmatmul.mubr.f32.gmra.mrb[0].mxu0 %v418
        %v544 = vpop.f32.mrb[0].mxu0
        %v545 = vadd.f32 %v427, %v544
        %v546 = vpop.f32.mrb[0].mxu0
        %547 = vmatprep.mubr.f32.mxu0 0.0
        %548 = vmatmul.mubr.f32.gmra.mrb[0].mxu0 %v419
        %v549 = vpop.f32.mrb[0].mxu0
        %v550 = vadd.f32 %v427, %v549
        %v551 = vpop.f32.mrb[0].mxu0
        %552 = vmatprep.mubr.f32.mxu0 0.0
        %553 = vmatmul.mubr.f32.gmra.mrb[0].mxu0 %v420
        %v554 = vpop.f32.mrb[0].mxu0
        %v555 = vadd.f32 %v427, %v554
        %v556 = vpop.f32.mrb[0].mxu0
        %557 = vmatprep.mubr.f32.mxu0 0.0
        %558 = vmatmul.mubr.f32.gmra.mrb[0].mxu0 %v421
        %v559 = vpop.f32.mrb[0].mxu0
        %v560 = vadd.f32 %v427, %v559
        %v561 = vpop.f32.mrb[0].mxu0
        %562 = vmatprep.mubr.f32.mxu0 0.0
        %563 = vmatmul.mubr.f32.gmra.mrb[0].mxu0 %v422
        %v564 = vpop.f32.mrb[0].mxu0
        %v565 = vadd.f32 %v427, %v564
        %v566 = vpop.f32.mrb[0].mxu0
        %567 = vmatprep.mubr.f32.mxu0 0.0
        %568 = vmatmul.mubr.f32.gmra.mrb[0].mxu0 %v423
        %v569 = vpop.f32.mrb[0].mxu0
        %v570 = vadd.f32 %v427, %v569
        %v571 = vpop.f32.mrb[0].mxu0
        %572 = vdwg.mxu0
        %v573 = vmul.f32 %v495, 0.1
        %v574 = vmul.f32 %v500, 0.1
        %v575 = vmul.f32 %v505, 0.1
        %v576 = vmul.f32 %v510, 0.1
        %v577 = vmul.f32 %v515, 0.1
        %v578 = vmul.f32 %v520, 0.1
        %v579 = vmul.f32 %v525, 0.1
        %v580 = vmul.f32 %v530, 0.1
        %v581 = vmul.f32 %v535, 0.1
        %v582 = vmul.f32 %v540, 0.1
        %v583 = vmul.f32 %v545, 0.1
        %v584 = vmul.f32 %v550, 0.1
        %v585 = vmul.f32 %v555, 0.1
        %v586 = vmul.f32 %v560, 0.1
        %v587 = vmul.f32 %v565, 0.1
        %v588 = vmul.f32 %v570, 0.1
        %589 = vmatprep.subr.mxu0 0.0
        %590 = vmatpush1.msra.mxu0 %v495
        %591 = vmatprep.subr.mxu0 0.0
        %592 = vmatpush1.msra.mxu0 %v500
        %593 = vmatprep.subr.mxu0 0.0
        %594 = vmatpush1.msra.mxu0 %v505
        %595 = vmatprep.subr.mxu0 0.0
        %596 = vmatpush1.msra.mxu0 %v510
        %597 = vmatprep.subr.mxu0 0.0
        %598 = vmatpush1.msra.mxu0 %v515
        %599 = vmatprep.subr.mxu0 0.0
        %600 = vmatpush1.msra.mxu0 %v520
        %601 = vmatprep.subr.mxu0 0.0
        %602 = vmatpush1.msra.mxu0 %v525
        %603 = vmatprep.subr.mxu0 0.0
        %604 = vmatpush1.msra.mxu0 %v530
        %605 = vmatprep.subr.mxu0 0.0
        %606 = vmatpush1.msra.mxu0 %v535
        %607 = vmatprep.subr.mxu0 0.0
        %608 = vmatpush1.msra.mxu0 %v540
        %609 = vmatprep.subr.mxu0 0.0
        %610 = vmatpush1.msra.mxu0 %v545
        %611 = vmatprep.subr.mxu0 0.0
        %612 = vmatpush1.msra.mxu0 %v550
        %613 = vmatprep.subr.mxu0 0.0
        %614 = vmatpush1.msra.mxu0 %v555
        %615 = vmatprep.subr.mxu0 0.0
        %616 = vmatpush1.msra.mxu0 %v560
        %617 = vmatprep.subr.mxu0 0.0
        %618 = vmatpush1.msra.mxu0 %v565
        %619 = vmatprep.subr.mxu0 0.0
        %620 = vmatpush1.msra.mxu0 %v570
        %621 = vmatprep.subr.mxu0 0.0
        %622 = vmatpush1.msra.mxu0 0.0
        %623 = vmatprep.subr.mxu0 0.0
        %624 = vmatpush1.msra.mxu0 0.0
        %625 = vmatprep.subr.mxu0 0.0
        %626 = vmatpush1.msra.mxu0 0.0
        %627 = vmatprep.subr.mxu0 0.0
        %628 = vmatpush1.msra.mxu0 0.0
        %629 = vmatprep.subr.mxu0 0.0
        %630 = vmatpush1.msra.mxu0 0.0
        %631 = vmatprep.subr.mxu0 0.0
        %632 = vmatpush1.msra.mxu0 0.0
        %633 = vmatprep.subr.mxu0 0.0
        %634 = vmatpush1.msra.mxu0 0.0
        %635 = vmatprep.subr.mxu0 0.0
        %636 = vmatpush1.msra.mxu0 0.0
        %637 = vmatprep.subr.mxu0 0.0
        %638 = vmatpush1.msra.mxu0 0.0
        %639 = vmatprep.subr.mxu0 0.0
        %640 = vmatpush1.msra.mxu0 0.0
        %641 = vmatprep.subr.mxu0 0.0
        %642 = vmatpush1.msra.mxu0 0.0
        %643 = vmatprep.subr.mxu0 0.0
        %644 = vmatpush1.msra.mxu0 0.0
        %645 = vmatprep.subr.mxu0 0.0
        %646 = vmatpush1.msra.mxu0 0.0
        %647 = vmatprep.subr.mxu0 0.0
        %648 = vmatpush1.msra.mxu0 0.0
        %649 = vmatprep.subr.mxu0 0.0
        %650 = vmatpush1.msra.mxu0 0.0
        %651 = vmatprep.subr.mxu0 0.0
        %652 = vmatpush1.msra.mxu0 0.0
        %653 = vmatprep.mubr.f32.mxu0 0.0
        %654 = vmatmul.mubr.f32.gmra.mrb[0].mxu0 %v193
        %v655 = vpop.f32.mrb[0].mxu0
        %v656 = vadd.f32 0.0, %v655
        %v657 = vpop.f32.mrb[0].mxu0
        %658 = vmatprep.mubr.f32.mxu0 0.0
        %659 = vmatmul.mubr.f32.gmra.mrb[0].mxu0 %v194
        %v660 = vpop.f32.mrb[0].mxu0
        %v661 = vadd.f32 0.0, %v660
        %v662 = vpop.f32.mrb[0].mxu0
        %663 = vmatprep.mubr.f32.mxu0 0.0
        %664 = vmatmul.mubr.f32.gmra.mrb[0].mxu0 %v195
        %v665 = vpop.f32.mrb[0].mxu0
        %v666 = vadd.f32 0.0, %v665
        %v667 = vpop.f32.mrb[0].mxu0
        %668 = vmatprep.mubr.f32.mxu0 0.0
        %669 = vmatmul.mubr.f32.gmra.mrb[0].mxu0 %v196
        %v670 = vpop.f32.mrb[0].mxu0
        %v671 = vadd.f32 0.0, %v670
        %v672 = vpop.f32.mrb[0].mxu0
        %673 = vmatprep.mubr.f32.mxu0 0.0
        %674 = vmatmul.mubr.f32.gmra.mrb[0].mxu0 %v197
        %v675 = vpop.f32.mrb[0].mxu0
        %v676 = vadd.f32 0.0, %v675
        %v677 = vpop.f32.mrb[0].mxu0
        %678 = vmatprep.mubr.f32.mxu0 0.0
        %679 = vmatmul.mubr.f32.gmra.mrb[0].mxu0 %v198
        %v680 = vpop.f32.mrb[0].mxu0
        %v681 = vadd.f32 0.0, %v680
        %v682 = vpop.f32.mrb[0].mxu0
        %683 = vmatprep.mubr.f32.mxu0 0.0
        %684 = vmatmul.mubr.f32.gmra.mrb[0].mxu0 %v199
        %v685 = vpop.f32.mrb[0].mxu0
        %v686 = vadd.f32 0.0, %v685
        %v687 = vpop.f32.mrb[0].mxu0
        %688 = vmatprep.mubr.f32.mxu0 0.0
        %689 = vmatmul.mubr.f32.gmra.mrb[0].mxu0 %v200
        %v690 = vpop.f32.mrb[0].mxu0
        %v691 = vadd.f32 0.0, %v690
        %v692 = vpop.f32.mrb[0].mxu0
        %693 = vmatprep.mubr.f32.mxu0 0.0
        %694 = vmatmul.mubr.f32.gmra.mrb[0].mxu0 %v201
        %v695 = vpop.f32.mrb[0].mxu0
        %v696 = vadd.f32 0.0, %v695
        %v697 = vpop.f32.mrb[0].mxu0
        %698 = vmatprep.mubr.f32.mxu0 0.0
        %699 = vmatmul.mubr.f32.gmra.mrb[0].mxu0 %v202
        %v700 = vpop.f32.mrb[0].mxu0
        %v701 = vadd.f32 0.0, %v700
        %v702 = vpop.f32.mrb[0].mxu0
        %703 = vmatprep.mubr.f32.mxu0 0.0
        %704 = vmatmul.mubr.f32.gmra.mrb[0].mxu0 %v203
        %v705 = vpop.f32.mrb[0].mxu0
        %v706 = vadd.f32 0.0, %v705
        %v707 = vpop.f32.mrb[0].mxu0
        %708 = vmatprep.mubr.f32.mxu0 0.0
        %709 = vmatmul.mubr.f32.gmra.mrb[0].mxu0 %v204
        %v710 = vpop.f32.mrb[0].mxu0
        %v711 = vadd.f32 0.0, %v710
        %v712 = vpop.f32.mrb[0].mxu0
        %713 = vmatprep.mubr.f32.mxu0 0.0
        %714 = vmatmul.mubr.f32.gmra.mrb[0].mxu0 %v205
        %v715 = vpop.f32.mrb[0].mxu0
        %v716 = vadd.f32 0.0, %v715
        %v717 = vpop.f32.mrb[0].mxu0
        %718 = vmatprep.mubr.f32.mxu0 0.0
        %719 = vmatmul.mubr.f32.gmra.mrb[0].mxu0 %v206
        %v720 = vpop.f32.mrb[0].mxu0
        %v721 = vadd.f32 0.0, %v720
        %v722 = vpop.f32.mrb[0].mxu0
        %723 = vmatprep.mubr.f32.mxu0 0.0
        %724 = vmatmul.mubr.f32.gmra.mrb[0].mxu0 %v207
        %v725 = vpop.f32.mrb[0].mxu0
        %v726 = vadd.f32 0.0, %v725
        %v727 = vpop.f32.mrb[0].mxu0
        %728 = vmatprep.mubr.f32.mxu0 0.0
        %729 = vmatmul.mubr.f32.gmra.mrb[0].mxu0 %v208
        %v730 = vpop.f32.mrb[0].mxu0
        %v731 = vadd.f32 0.0, %v730
        %v732 = vpop.f32.mrb[0].mxu0
        %733 = vdwg.mxu0
        %v734 = vmul.f32 %v656, 0.9
        %v735 = vmul.f32 %v661, 0.9
        %v736 = vmul.f32 %v666, 0.9
        %v737 = vmul.f32 %v671, 0.9
        %v738 = vmul.f32 %v676, 0.9
        %v739 = vmul.f32 %v681, 0.9
        %v740 = vmul.f32 %v686, 0.9
        %v741 = vmul.f32 %v691, 0.9
        %v742 = vmul.f32 %v696, 0.9
        %v743 = vmul.f32 %v701, 0.9
        %v744 = vmul.f32 %v706, 0.9
        %v745 = vmul.f32 %v711, 0.9
        %v746 = vmul.f32 %v716, 0.9
        %v747 = vmul.f32 %v721, 0.9
        %v748 = vmul.f32 %v726, 0.9
        %v749 = vmul.f32 %v731, 0.9
        %v750 = vadd.f32 %v734, %v573
        %v751 = vadd.f32 %v735, %v574
        %v752 = vadd.f32 %v736, %v575
        %v753 = vadd.f32 %v737, %v576
        %v754 = vadd.f32 %v738, %v577
        %v755 = vadd.f32 %v739, %v578
        %v756 = vadd.f32 %v740, %v579
        %v757 = vadd.f32 %v741, %v580
        %v758 = vadd.f32 %v742, %v581
        %v759 = vadd.f32 %v743, %v582
        %v760 = vadd.f32 %v744, %v583
        %v761 = vadd.f32 %v745, %v584
        %v762 = vadd.f32 %v746, %v585
        %v763 = vadd.f32 %v747, %v586
        %v764 = vadd.f32 %v748, %v587
        %v765 = vadd.f32 %v749, %v588
        %766 = vmatprep.subr.mxu0 0.0
        %767 = vmatpush1.msra.mxu0 %v750
        %768 = vmatprep.subr.mxu0 0.0
        %769 = vmatpush1.msra.mxu0 %v751
        %770 = vmatprep.subr.mxu0 0.0
        %771 = vmatpush1.msra.mxu0 %v752
        %772 = vmatprep.subr.mxu0 0.0
        %773 = vmatpush1.msra.mxu0 %v753
        %774 = vmatprep.subr.mxu0 0.0
        %775 = vmatpush1.msra.mxu0 %v754
        %776 = vmatprep.subr.mxu0 0.0
        %777 = vmatpush1.msra.mxu0 %v755
        %778 = vmatprep.subr.mxu0 0.0
        %779 = vmatpush1.msra.mxu0 %v756
        %780 = vmatprep.subr.mxu0 0.0
        %781 = vmatpush1.msra.mxu0 %v757
        %782 = vmatprep.subr.mxu0 0.0
        %783 = vmatpush1.msra.mxu0 %v758
        %784 = vmatprep.subr.mxu0 0.0
        %785 = vmatpush1.msra.mxu0 %v759
        %786 = vmatprep.subr.mxu0 0.0
        %787 = vmatpush1.msra.mxu0 %v760
        %788 = vmatprep.subr.mxu0 0.0
        %789 = vmatpush1.msra.mxu0 %v761
        %790 = vmatprep.subr.mxu0 0.0
        %791 = vmatpush1.msra.mxu0 %v762
        %792 = vmatprep.subr.mxu0 0.0
        %793 = vmatpush1.msra.mxu0 %v763
        %794 = vmatprep.subr.mxu0 0.0
        %795 = vmatpush1.msra.mxu0 %v764
        %796 = vmatprep.subr.mxu0 0.0
        %797 = vmatpush1.msra.mxu0 %v765
        %798 = vmatprep.subr.mxu0 0.0
        %799 = vmatpush1.msra.mxu0 0.0
        %800 = vmatprep.subr.mxu0 0.0
        %801 = vmatpush1.msra.mxu0 0.0
        %802 = vmatprep.subr.mxu0 0.0
        %803 = vmatpush1.msra.mxu0 0.0
        %804 = vmatprep.subr.mxu0 0.0
        %805 = vmatpush1.msra.mxu0 0.0
        %806 = vmatprep.subr.mxu0 0.0
        %807 = vmatpush1.msra.mxu0 0.0
        %808 = vmatprep.subr.mxu0 0.0
        %809 = vmatpush1.msra.mxu0 0.0
        %810 = vmatprep.subr.mxu0 0.0
        %811 = vmatpush1.msra.mxu0 0.0
        %812 = vmatprep.subr.mxu0 0.0
        %813 = vmatpush1.msra.mxu0 0.0
        %814 = vmatprep.subr.mxu0 0.0
        %815 = vmatpush1.msra.mxu0 0.0
        %816 = vmatprep.subr.mxu0 0.0
        %817 = vmatpush1.msra.mxu0 0.0
        %818 = vmatprep.subr.mxu0 0.0
        %819 = vmatpush1.msra.mxu0 0.0
        %820 = vmatprep.subr.mxu0 0.0
        %821 = vmatpush1.msra.mxu0 0.0
        %822 = vmatprep.subr.mxu0 0.0
        %823 = vmatpush1.msra.mxu0 0.0
        %824 = vmatprep.subr.mxu0 0.0
        %825 = vmatpush1.msra.mxu0 0.0
        %826 = vmatprep.subr.mxu0 0.0
        %827 = vmatpush1.msra.mxu0 0.0
        %828 = vmatprep.subr.mxu0 0.0
        %829 = vmatpush1.msra.mxu0 0.0
        %830 = vmatprep.mubr.f32.mxu0 0.0
        %831 = vmatmul.mubr.f32.gmra.mrb[0].mxu0 %v193
        %v832 = vpop.f32.mrb[0].mxu0
        %v833 = vadd.f32 0.0, %v832
        %v834 = vpop.f32.mrb[0].mxu0
        %835 = vmatprep.mubr.f32.mxu0 0.0
        %836 = vmatmul.mubr.f32.gmra.mrb[0].mxu0 %v194
        %v837 = vpop.f32.mrb[0].mxu0
        %v838 = vadd.f32 0.0, %v837
        %v839 = vpop.f32.mrb[0].mxu0
        %840 = vmatprep.mubr.f32.mxu0 0.0
        %841 = vmatmul.mubr.f32.gmra.mrb[0].mxu0 %v195
        %v842 = vpop.f32.mrb[0].mxu0
        %v843 = vadd.f32 0.0, %v842
        %v844 = vpop.f32.mrb[0].mxu0
        %845 = vmatprep.mubr.f32.mxu0 0.0
        %846 = vmatmul.mubr.f32.gmra.mrb[0].mxu0 %v196
        %v847 = vpop.f32.mrb[0].mxu0
        %v848 = vadd.f32 0.0, %v847
        %v849 = vpop.f32.mrb[0].mxu0
        %850 = vmatprep.mubr.f32.mxu0 0.0
        %851 = vmatmul.mubr.f32.gmra.mrb[0].mxu0 %v197
        %v852 = vpop.f32.mrb[0].mxu0
        %v853 = vadd.f32 0.0, %v852
        %v854 = vpop.f32.mrb[0].mxu0
        %855 = vmatprep.mubr.f32.mxu0 0.0
        %856 = vmatmul.mubr.f32.gmra.mrb[0].mxu0 %v198
        %v857 = vpop.f32.mrb[0].mxu0
        %v858 = vadd.f32 0.0, %v857
        %v859 = vpop.f32.mrb[0].mxu0
        %860 = vmatprep.mubr.f32.mxu0 0.0
        %861 = vmatmul.mubr.f32.gmra.mrb[0].mxu0 %v199
        %v862 = vpop.f32.mrb[0].mxu0
        %v863 = vadd.f32 0.0, %v862
        %v864 = vpop.f32.mrb[0].mxu0
        %865 = vmatprep.mubr.f32.mxu0 0.0
        %866 = vmatmul.mubr.f32.gmra.mrb[0].mxu0 %v200
        %v867 = vpop.f32.mrb[0].mxu0
        %v868 = vadd.f32 0.0, %v867
        %v869 = vpop.f32.mrb[0].mxu0
        %870 = vmatprep.mubr.f32.mxu0 0.0
        %871 = vmatmul.mubr.f32.gmra.mrb[0].mxu0 %v201
        %v872 = vpop.f32.mrb[0].mxu0
        %v873 = vadd.f32 0.0, %v872
        %v874 = vpop.f32.mrb[0].mxu0
        %875 = vmatprep.mubr.f32.mxu0 0.0
        %876 = vmatmul.mubr.f32.gmra.mrb[0].mxu0 %v202
        %v877 = vpop.f32.mrb[0].mxu0
        %v878 = vadd.f32 0.0, %v877
        %v879 = vpop.f32.mrb[0].mxu0
        %880 = vmatprep.mubr.f32.mxu0 0.0
        %881 = vmatmul.mubr.f32.gmra.mrb[0].mxu0 %v203
        %v882 = vpop.f32.mrb[0].mxu0
        %v883 = vadd.f32 0.0, %v882
        %v884 = vpop.f32.mrb[0].mxu0
        %885 = vmatprep.mubr.f32.mxu0 0.0
        %886 = vmatmul.mubr.f32.gmra.mrb[0].mxu0 %v204
        %v887 = vpop.f32.mrb[0].mxu0
        %v888 = vadd.f32 0.0, %v887
        %v889 = vpop.f32.mrb[0].mxu0
        %890 = vmatprep.mubr.f32.mxu0 0.0
        %891 = vmatmul.mubr.f32.gmra.mrb[0].mxu0 %v205
        %v892 = vpop.f32.mrb[0].mxu0
        %v893 = vadd.f32 0.0, %v892
        %v894 = vpop.f32.mrb[0].mxu0
        %895 = vmatprep.mubr.f32.mxu0 0.0
        %896 = vmatmul.mubr.f32.gmra.mrb[0].mxu0 %v206
        %v897 = vpop.f32.mrb[0].mxu0
        %v898 = vadd.f32 0.0, %v897
        %v899 = vpop.f32.mrb[0].mxu0
        %900 = vmatprep.mubr.f32.mxu0 0.0
        %901 = vmatmul.mubr.f32.gmra.mrb[0].mxu0 %v207
        %v902 = vpop.f32.mrb[0].mxu0
        %v903 = vadd.f32 0.0, %v902
        %v904 = vpop.f32.mrb[0].mxu0
        %905 = vmatprep.mubr.f32.mxu0 0.0
        %906 = vmatmul.mubr.f32.gmra.mrb[0].mxu0 %v208
        %v907 = vpop.f32.mrb[0].mxu0
        %v908 = vadd.f32 0.0, %v907
        %v909 = vpop.f32.mrb[0].mxu0
        %910 = vdwg.mxu0
        %v911 = vmul.f32 %v833, 0.9
        %v912 = vmul.f32 %v838, 0.9
        %v913 = vmul.f32 %v843, 0.9
        %v914 = vmul.f32 %v848, 0.9
        %v915 = vmul.f32 %v853, 0.9
        %v916 = vmul.f32 %v858, 0.9
        %v917 = vmul.f32 %v863, 0.9
        %v918 = vmul.f32 %v868, 0.9
        %v919 = vmul.f32 %v873, 0.9
        %v920 = vmul.f32 %v878, 0.9
        %v921 = vmul.f32 %v883, 0.9
        %v922 = vmul.f32 %v888, 0.9
        %v923 = vmul.f32 %v893, 0.9
        %v924 = vmul.f32 %v898, 0.9
        %v925 = vmul.f32 %v903, 0.9
        %v926 = vmul.f32 %v908, 0.9
        %v927 = vadd.f32 %v911, %v573
        %v928 = vadd.f32 %v912, %v574
        %v929 = vadd.f32 %v913, %v575
        %v930 = vadd.f32 %v914, %v576
        %v931 = vadd.f32 %v915, %v577
        %v932 = vadd.f32 %v916, %v578
        %v933 = vadd.f32 %v917, %v579
        %v934 = vadd.f32 %v918, %v580
        %v935 = vadd.f32 %v919, %v581
        %v936 = vadd.f32 %v920, %v582
        %v937 = vadd.f32 %v921, %v583
        %v938 = vadd.f32 %v922, %v584
        %v939 = vadd.f32 %v923, %v585
        %v940 = vadd.f32 %v924, %v586
        %v941 = vadd.f32 %v925, %v587
        %v942 = vadd.f32 %v926, %v588
        %943 = vmatprep.subr.mxu0 0.0
        %944 = vmatpush1.msra.mxu0 %v927
        %945 = vmatprep.subr.mxu0 0.0
        %946 = vmatpush1.msra.mxu0 %v928
        %947 = vmatprep.subr.mxu0 0.0
        %948 = vmatpush1.msra.mxu0 %v929
        %949 = vmatprep.subr.mxu0 0.0
        %950 = vmatpush1.msra.mxu0 %v930
        %951 = vmatprep.subr.mxu0 0.0
        %952 = vmatpush1.msra.mxu0 %v931
        %953 = vmatprep.subr.mxu0 0.0
        %954 = vmatpush1.msra.mxu0 %v932
        %955 = vmatprep.subr.mxu0 0.0
        %956 = vmatpush1.msra.mxu0 %v933
        %957 = vmatprep.subr.mxu0 0.0
        %958 = vmatpush1.msra.mxu0 %v934
        %959 = vmatprep.subr.mxu0 0.0
        %960 = vmatpush1.msra.mxu0 %v935
        %961 = vmatprep.subr.mxu0 0.0
        %962 = vmatpush1.msra.mxu0 %v936
        %963 = vmatprep.subr.mxu0 0.0
        %964 = vmatpush1.msra.mxu0 %v937
        %965 = vmatprep.subr.mxu0 0.0
        %966 = vmatpush1.msra.mxu0 %v938
        %967 = vmatprep.subr.mxu0 0.0
        %968 = vmatpush1.msra.mxu0 %v939
        %969 = vmatprep.subr.mxu0 0.0
        %970 = vmatpush1.msra.mxu0 %v940
        %971 = vmatprep.subr.mxu0 0.0
        %972 = vmatpush1.msra.mxu0 %v941
        %973 = vmatprep.subr.mxu0 0.0
        %974 = vmatpush1.msra.mxu0 %v942
        %975 = vmatprep.subr.mxu0 0.0
        %976 = vmatpush1.msra.mxu0 0.0
        %977 = vmatprep.subr.mxu0 0.0
        %978 = vmatpush1.msra.mxu0 0.0
        %979 = vmatprep.subr.mxu0 0.0
        %980 = vmatpush1.msra.mxu0 0.0
        %981 = vmatprep.subr.mxu0 0.0
        %982 = vmatpush1.msra.mxu0 0.0
        %983 = vmatprep.subr.mxu0 0.0
        %984 = vmatpush1.msra.mxu0 0.0
        %985 = vmatprep.subr.mxu0 0.0
        %986 = vmatpush1.msra.mxu0 0.0
        %987 = vmatprep.subr.mxu0 0.0
        %988 = vmatpush1.msra.mxu0 0.0
        %989 = vmatprep.subr.mxu0 0.0
        %990 = vmatpush1.msra.mxu0 0.0
        %991 = vmatprep.subr.mxu0 0.0
        %992 = vmatpush1.msra.mxu0 0.0
        %993 = vmatprep.subr.mxu0 0.0
        %994 = vmatpush1.msra.mxu0 0.0
        %995 = vmatprep.subr.mxu0 0.0
        %996 = vmatpush1.msra.mxu0 0.0
        %997 = vmatprep.subr.mxu0 0.0
        %998 = vmatpush1.msra.mxu0 0.0
        %999 = vmatprep.subr.mxu0 0.0
        %1000 = vmatpush1.msra.mxu0 0.0
        %1001 = vmatprep.subr.mxu0 0.0
        %1002 = vmatpush1.msra.mxu0 0.0
        %1003 = vmatprep.subr.mxu0 0.0
        %1004 = vmatpush1.msra.mxu0 0.0
        %1005 = vmatprep.subr.mxu0 0.0
        %1006 = vmatpush1.msra.mxu0 0.0
        %1007 = vmatprep.mubr.f32.mxu0 0.0
        %1008 = vmatmul.mubr.f32.gmra.mrb[0].mxu0 %v209
        %v1009 = vpop.f32.mrb[0].mxu0
        %v1010 = vadd.f32 0.0, %v1009
        %v1011 = vpop.f32.mrb[0].mxu0
        %1012 = vdwg.mxu0
        %v1013 = vlaneseq
        %v1014 = vshrl.u32 %v1013, 7
        %v1015 = vsub.s32 2, %v1014
        %v1016 = vrot.slane %v258, %v1015
        %1017 = vmatprep.subr.mxu0 0.0
        %1018 = vmatpush1.msra.mxu0 %v242
        %1019 = vmatprep.subr.mxu0 0.0
        %1020 = vmatpush1.msra.mxu0 %v243
        %1021 = vmatprep.subr.mxu0 0.0
        %1022 = vmatpush1.msra.mxu0 %v244
        %1023 = vmatprep.subr.mxu0 0.0
        %1024 = vmatpush1.msra.mxu0 %v245
        %1025 = vmatprep.subr.mxu0 0.0
        %1026 = vmatpush1.msra.mxu0 %v246
        %1027 = vmatprep.subr.mxu0 0.0
        %1028 = vmatpush1.msra.mxu0 %v247
        %1029 = vmatprep.subr.mxu0 0.0
        %1030 = vmatpush1.msra.mxu0 %v248
        %1031 = vmatprep.subr.mxu0 0.0
        %1032 = vmatpush1.msra.mxu0 %v249
        %1033 = vmatprep.subr.mxu0 0.0
        %1034 = vmatpush1.msra.mxu0 %v250
        %1035 = vmatprep.subr.mxu0 0.0
        %1036 = vmatpush1.msra.mxu0 %v251
        %1037 = vmatprep.subr.mxu0 0.0
        %1038 = vmatpush1.msra.mxu0 %v252
        %1039 = vmatprep.subr.mxu0 0.0
        %1040 = vmatpush1.msra.mxu0 %v253
        %1041 = vmatprep.subr.mxu0 0.0
        %1042 = vmatpush1.msra.mxu0 %v254
        %1043 = vmatprep.subr.mxu0 0.0
        %1044 = vmatpush1.msra.mxu0 %v255
        %1045 = vmatprep.subr.mxu0 0.0
        %1046 = vmatpush1.msra.mxu0 %v256
        %1047 = vmatprep.subr.mxu0 0.0
        %1048 = vmatpush1.msra.mxu0 %v257
        %1049 = vmatprep.subr.mxu0 0.0
        %1050 = vmatpush1.msra.mxu0 0.0
        %1051 = vmatprep.subr.mxu0 0.0
        %1052 = vmatpush1.msra.mxu0 0.0
        %1053 = vmatprep.subr.mxu0 0.0
        %1054 = vmatpush1.msra.mxu0 0.0
        %1055 = vmatprep.subr.mxu0 0.0
        %1056 = vmatpush1.msra.mxu0 0.0
        %1057 = vmatprep.subr.mxu0 0.0
        %1058 = vmatpush1.msra.mxu0 0.0
        %1059 = vmatprep.subr.mxu0 0.0
        %1060 = vmatpush1.msra.mxu0 0.0
        %1061 = vmatprep.subr.mxu0 0.0
        %1062 = vmatpush1.msra.mxu0 0.0
        %1063 = vmatprep.subr.mxu0 0.0
        %1064 = vmatpush1.msra.mxu0 0.0
        %1065 = vmatprep.subr.mxu0 0.0
        %1066 = vmatpush1.msra.mxu0 0.0
        %1067 = vmatprep.subr.mxu0 0.0
        %1068 = vmatpush1.msra.mxu0 0.0
        %1069 = vmatprep.subr.mxu0 0.0
        %1070 = vmatpush1.msra.mxu0 0.0
        %1071 = vmatprep.subr.mxu0 0.0
        %1072 = vmatpush1.msra.mxu0 0.0
        %1073 = vmatprep.subr.mxu0 0.0
        %1074 = vmatpush1.msra.mxu0 0.0
        %1075 = vmatprep.subr.mxu0 0.0
        %1076 = vmatpush1.msra.mxu0 0.0
        %1077 = vmatprep.subr.mxu0 0.0
        %1078 = vmatpush1.msra.mxu0 0.0
        %1079 = vmatprep.subr.mxu0 0.0
        %1080 = vmatpush1.msra.mxu0 0.0
        %1081 = vmatprep.mubr.f32.mxu0 0.0
        %1082 = vmatmul.mubr.f32.gmra.mrb[0].mxu0 %v1010
        %v1083 = vpop.f32.mrb[0].mxu0
        %v1084 = vadd.f32 %v1016, %v1083
        %v1085 = vpop.f32.mrb[0].mxu0
        %1086 = vdwg.mxu0
        %1087 = vst [vmem:[%s176] sm:$0xff] %v1084
        %s1088 = sand.u32 %s75, 1
        %s1089 = scalar_lea.sflag [#allocation4], %s1088
        %s1090 = sand.u32 %s75, 1
        %s1091 = smul.addr %s1090, 8
        %s1092 = scalar_lea.vmem [#allocation7], %s1091
        // Predicated region
        $region37: #{tpu_custom_call.1} parent=27 // pred_check
          %p1093 = pneg %p85
        $region38: #{tpu_custom_call.1} parent=27 // pred_check_branch
          %1095 = sbr.rel (%p1093) target = $region40
        $region39: #{tpu_custom_call.1} parent=27 // pred_region
          %s1097 = ssub.s32 128, 128
          %1098 = vsyncadd %s1089, %s1097
          %s1099 = smul.addr %s20, 128
          %s1100 = scalar_lea.hbm %s2, %s1099
          %s1102 = sshll.u32 %s1092, 4
          %s1103 = int_to_ptr.vmem [resolvable:$true] %s1102
          %1105 = dma.vmem_to_hbm [thread:$0]  %s1103, 128, %s1100, %s1089
        $region40: #{tpu_custom_call.1} parent=27 // pred_fallthru
          _
      $region28: #{tpu_custom_call.1} parent=5 // pred_fallthru
        _
      %p1106 = scmp.le.s32.totalorder 2, %s15
      // Predicated region
      $region41: #{tpu_custom_call.1} parent=5 // pred_check
        %p1107 = pneg %p1106
      $region42: #{tpu_custom_call.1} parent=5 // pred_check_branch
        %1109 = sbr.rel (%p1107) target = $region44
      $region43: #{tpu_custom_call.1} parent=5 // pred_region
        %s1110 = ssub.s32 %s15, 2
        // Predicated region
        $region45: #{tpu_custom_call.1} parent=43 // pred_check
          %p1111 = pneg %p91
        $region46: #{tpu_custom_call.1} parent=43 // pred_check_branch
          %1113 = sbr.rel (%p1111) target = $region48
        $region47: #{tpu_custom_call.1} parent=43 // pred_region
          %s1114 = sand.u32 %s76, 1
          %s1115 = scalar_lea.sflag [#allocation4], %s1114
          %s1116 = sand.u32 %s76, 1
          %s1117 = smul.addr %s1116, 8
          %s1118 = scalar_lea.vmem [#allocation7], %s1117
          %1119 = dma.done %s1115, 128
        $region48: #{tpu_custom_call.1} parent=43 // pred_fallthru
          _
      $region44: #{tpu_custom_call.1} parent=5 // pred_fallthru
        _
    $region6: #{tpu_custom_call.1} parent=1 // loop_footer
      %s19 = sadd.s32 1, %s15
    $region7: #{tpu_custom_call.1} parent=1 // loop_footer_branch
      %14 = sbr.rel target = $region3
    $region8: #{tpu_custom_call.1} parent=1 // loop_exit
      _
    %1120 = vsyncpa [#allocation3], 1
    %s1121 = scalar_lea.sflag [#allocation3], 1
    %1122 = vsyncpa %s1121, 1
    %1123 = vsyncpa [#allocation6], 1
    %1124 = vsyncpa [#allocation4], 1
    %s1125 = scalar_lea.sflag [#allocation4], 1
    %1126 = vsyncpa %s1125, 1

</llo_original>
